<compile_context>
chip_gen: v6e
topology: v6e:2x2x1
jax: 0.10.0
libtpu: 0.0.40
codegen_flags: <defaults>
</compile_context>

<pallas_src>
import jax
import jax.numpy as jnp
from jax import lax
from jax.experimental import pallas as pl
from jax.experimental.pallas import tpu as pltpu

MAX_LEN = 362       # matches padding_mask(..., max_len=362) in the reference
MASK_PAD = 384      # 3 * 128 lanes -> lane-dense, unmasked vector stores
_SUBLANE = 8


def _mask_kernel(x_ref, seg_ref, mask_ref):
    """Compute the padding mask for one batch tile.

    x_ref:    [TB, T*F]      native dtype, lane-dense flattened (time, feature)
    seg_ref:  [T*F, T]       bf16 block-diagonal ones: seg[j, t] = 1 iff j//F == t
                             (whole-array VMEM resident, not pipelined)
    mask_ref: [TB, MASK_PAD] int8, mask[b, m] = (m < length[b])
    """
    x = x_ref[...]
    nonzero = (x != 0).astype(jnp.bfloat16)                      # [TB, T*F] 0/1
    # counts[b, t] = number of nonzero features at timepoint t (MXU matmul).
    # bf16 operands + f32 accumulation keep this exact (small integer values).
    counts = jnp.dot(nonzero, seg_ref[...],
                     preferred_element_type=jnp.float32)         # [TB, T]
    tb, t = counts.shape

    # first index t with an all-zero timepoint; T if none (mirrors break-loop)
    is_zero = counts == 0.0
    t_idx = lax.broadcasted_iota(jnp.int32, (tb, t), 1)
    lengths = jnp.min(jnp.where(is_zero, t_idx, jnp.int32(t)),
                      axis=-1, keepdims=True)                    # [TB, 1]

    # padding_mask(lengths, max_len): mask[b, m] = m < lengths[b]
    m_idx = lax.broadcasted_iota(jnp.int32, (tb, MASK_PAD), 1)
    mask_ref[...] = (m_idx < lengths).astype(jnp.int8)


def _round_up(x, m):
    return ((x + m - 1) // m) * m


def _vmem_limit_bytes():
    """Generation-aware scoped-VMEM limit: half of physical, capped at 64 MiB.

    v5e/v6e (128 MiB physical) -> 64 MiB; v7x (64 MiB physical) -> 32 MiB.
    """
    try:
        phys = int(pltpu.get_tpu_info().vmem_capacity_bytes)
    except Exception:
        phys = 64 * 1024 * 1024
    return max(16 * 1024 * 1024, min(64 * 1024 * 1024, phys // 2))


def _choose_batch_tile(batch, t, f, x_itemsize, vmem_limit):
    """Largest batch tile whose full VMEM picture fits in vmem_limit.

    Per grid step (per batch row):
      2 * T*F * itemsize      -- double-buffered X tile
      T*F * 2                 -- bf16 `nonzero` MXU operand
      2 * MASK_PAD            -- double-buffered int8 mask tile
      ~4*T + 4*MASK_PAD       -- counts / iota / compare temps (f32)
    plus a fixed, single-buffered bf16 seg matrix: T*F * T * 2.
    """
    per_row = (2 * t * f * x_itemsize) + (t * f * 2) + (2 * MASK_PAD) \
              + 4 * t + 4 * MASK_PAD
    fixed = t * f * t * 2
    budget = int(vmem_limit * 0.75) - fixed
    tb = max(1, budget // max(1, per_row))
    # Keep >= ~4 grid steps so v7x's two TensorCores both get work and the
    # DMA pipeline has something to overlap (no-op for tiny batches).
    tb = min(tb, max(_SUBLANE, _round_up(pl.cdiv(batch, 4), _SUBLANE)))
    if tb >= batch:
        return batch                       # full-dim block is always layout-legal
    return max(_SUBLANE, (tb // _SUBLANE) * _SUBLANE)
    # TODO(synk): for extremely wide rows (T*F*itemsize approaching VMEM), add a
    # second 'arbitrary' grid axis over T*F with a VMEM counts accumulator.


def model_wrapper_forward(x):
    """JAX/Pallas equivalent of ModelWrapper.forward.

    Args:
      x: [B, T, F] float array (native dtype preserved, no upcast pass).
    Returns:
      (x, padding_masks) with padding_masks: [B, MAX_LEN] bool.
    """
    x = jnp.asarray(x)
    B, T, F = x.shape
    x2d = x.reshape(B, T * F)              # lane-dense layout (contiguous reshape)

    # Block-diagonal ones matrix (bf16), fetched once, whole-array VMEM resident.
    j = lax.broadcasted_iota(jnp.int32, (T * F, T), 0) // F
    tt = lax.broadcasted_iota(jnp.int32, (T * F, T), 1)
    seg_ones = (j == tt).astype(jnp.bfloat16)

    vmem_limit = _vmem_limit_bytes()
    tb = _choose_batch_tile(B, T, F, x.dtype.itemsize, vmem_limit)
    grid = (pl.cdiv(B, tb),)

    cost = pl.CostEstimate(
        flops=2 * B * (T * F) * T,
        transcendentals=0,
        bytes_accessed=B * T * F * x.dtype.itemsize + B * MASK_PAD
                       + (T * F) * T * 2,
    )

    mask_i8 = pl.pallas_call(
        _mask_kernel,
        out_shape=jax.ShapeDtypeStruct((B, MASK_PAD), jnp.int8),
        grid_spec=pltpu.PrefetchScalarGridSpec(
            num_scalar_prefetch=0,
            grid=grid,
            in_specs=[
                pl.BlockSpec((tb, T * F), lambda i: (i, 0)),
                # seg: single VMEM-resident copy, not double-buffered.
                pl.BlockSpec(memory_space=pltpu.MemorySpace.VMEM),
            ],
            out_specs=pl.BlockSpec((tb, MASK_PAD), lambda i: (i, 0)),
        ),
        compiler_params=pltpu.CompilerParams(
            dimension_semantics=("parallel",),    # batch axis -> megacore on v7x
            vmem_limit_bytes=vmem_limit,
        ),
        cost_estimate=cost,
    )(x2d, seg_ones)

    # Tiny post-ops on the mask only (no extra pass over X).
    padding_masks = mask_i8[:, :MAX_LEN].astype(jnp.bool_)

    # TODO(synk): return self.model(x, padding_masks, transform) — model is undefined.
    return x, padding_masks


if __name__ == "__main__":
    key = jax.random.PRNGKey(0)

    # Small shape consistent with the module: [B, T, F]
    B, T, F = 2, 16, 8
    X = jax.random.normal(key, (B, T, F), dtype=jnp.float32)
    X = X.at[0, 10:, :].set(0.0)   # sample 0: padding starts at t=10 -> length 10
    X = X.at[1, 13:, :].set(0.0)   # sample 1: padding starts at t=13 -> length 13

    x_out, masks = model_wrapper_forward(X)
    jax.block_until_ready((x_out, masks))
    assert masks.shape == (B, MAX_LEN) and masks.dtype == jnp.bool_, masks.shape
    assert int(masks[0].sum()) == 10, int(masks[0].sum())
    assert int(masks[1].sum()) == 13, int(masks[1].sum())
    assert bool(masks[0, 9]) and not bool(masks[0, 10])

    # mirror the module-level `X = X[0].unsqueeze(0)` from the reference
    x1, m1 = model_wrapper_forward(X[0:1])
    jax.block_until_ready((x1, m1))
    assert m1.shape == (1, MAX_LEN) and int(m1[0].sum()) == 10

    # multi-step grid + non-divisible batch (B=10 -> tb=8, grid=2, partial block)
    B2 = 10
    X2 = jax.random.normal(jax.random.PRNGKey(1), (B2, T, F), dtype=jnp.float32)
    lens = [min(T, 6 + b) for b in range(B2)]
    lens[-1] = T                               # one sample with no padding -> length T
    for b, L in enumerate(lens):
        if L < T:
            X2 = X2.at[b, L:, :].set(0.0)
    _, m2 = model_wrapper_forward(X2)
    jax.block_until_ready(m2)
    for b, L in enumerate(lens):
        assert int(m2[b].sum()) == L, (b, L, int(m2[b].sum()))

    print("KERNEL_OK")
</pallas_src>

<mosaic_0001>
module attributes {stable_mosaic.version = 11 : i64} {
  func.func @_mask_kernel(%arg0: i32, %arg1: memref<2x128xf32, #tpu.memory_space<vmem>>, %arg2: memref<128x16xbf16, #tpu.memory_space<vmem>>, %arg3: memref<2x384xi8, #tpu.memory_space<vmem>>) attributes {dimension_semantics = [#tpu.dimension_semantics<parallel>], iteration_bounds = array<i64: 1>, scalar_prefetch = 0 : i64, scratch_operands = 0 : i64, tpu.core_type = #tpu.core_type<tc>, window_params = [{transform_indices = @transform_0, window_bounds = array<i64: 2, 128>}, {pipeline_mode = #tpu.pipeline_mode<synchronous>, transform_indices = @transform_1, window_bounds = array<i64: 128, 16>}, {transform_indices = @transform_2, window_bounds = array<i64: 2, 384>}]} {
    %c0 = arith.constant 0 : index
    %c0_0 = arith.constant 0 : index
    %0 = vector.load %arg1[%c0, %c0_0] : memref<2x128xf32, #tpu.memory_space<vmem>>, vector<2x128xf32>
    %cst = arith.constant 0.000000e+00 : f32
    %1 = vector.broadcast %cst : f32 to vector<2x128xf32>
    %2 = arith.cmpf one, %0, %1 : vector<2x128xf32>
    %3 = arith.extui %2 : vector<2x128xi1> to vector<2x128xi32>
    %4 = arith.sitofp %3 : vector<2x128xi32> to vector<2x128xf32>
    %5 = arith.truncf %4 : vector<2x128xf32> to vector<2x128xbf16>
    %c0_1 = arith.constant 0 : index
    %c0_2 = arith.constant 0 : index
    %6 = vector.load %arg2[%c0_1, %c0_2] : memref<128x16xbf16, #tpu.memory_space<vmem>>, vector<128x16xbf16>
    %cst_3 = arith.constant dense<0.000000e+00> : vector<2x16xf32>
    %7 = tpu.matmul %5, %6, %cst_3 {dimension_numbers = #tpu.dot_dimension_numbers<[1], [0], [0], [1], [0, 0, 1, 1], [], []>} : vector<2x128xbf16>, vector<128x16xbf16>, vector<2x16xf32> -> vector<2x16xf32>
    %cst_4 = arith.constant 0.000000e+00 : f32
    %8 = vector.broadcast %cst_4 : f32 to vector<2x16xf32>
    %9 = arith.cmpf oeq, %7, %8 : vector<2x16xf32>
    %10 = tpu.iota {dimensions = array<i32: 1>} : vector<2x16xi32>
    %c16_i32 = arith.constant 16 : i32
    %11 = vector.broadcast %c16_i32 : i32 to vector<2x16xi32>
    %12 = arith.select %9, %10, %11 : vector<2x16xi1>, vector<2x16xi32>
    %cst_5 = arith.constant dense<2147483647> : vector<2xi32>
    %13 = vector.multi_reduction <minsi>, %12, %cst_5 [1] : vector<2x16xi32> to vector<2xi32>
    %14 = vector.shape_cast %13 : vector<2xi32> to vector<2x1xi32>
    %15 = tpu.iota {dimensions = array<i32: 1>} : vector<2x384xi32>
    %16 = vector.broadcast %14 : vector<2x1xi32> to vector<2x384xi32>
    %17 = arith.cmpi slt, %15, %16 : vector<2x384xi32>
    %18 = arith.extui %17 : vector<2x384xi1> to vector<2x384xi8>
    %c0_6 = arith.constant 0 : index
    %c0_7 = arith.constant 0 : index
    %19 = vector.load %arg3[%c0_6, %c0_7] : memref<2x384xi8, #tpu.memory_space<vmem>>, vector<2x384xi8>
    tpu.vector_store %arg3[%c0_6, %c0_7], %18 {strides = array<i32>} : memref<2x384xi8, #tpu.memory_space<vmem>>, vector<2x384xi8>,
    return
  }
  func.func @transform_0(%arg0: i32) -> (i32, i32) {
    %c0_i32 = arith.constant 0 : i32
    %c0_i32_0 = arith.constant 0 : i32
    return %arg0, %c0_i32 : i32, i32
  }
  func.func @transform_1(%arg0: i32) -> (i32, i32) {
    %c0_i32 = arith.constant 0 : i32
    %c0_i32_0 = arith.constant 0 : i32
    %c0_i32_1 = arith.constant 0 : i32
    return %c0_i32, %c0_i32_0 : i32, i32
  }
  func.func @transform_2(%arg0: i32) -> (i32, i32) {
    %c0_i32 = arith.constant 0 : i32
    %c0_i32_0 = arith.constant 0 : i32
    return %arg0, %c0_i32 : i32, i32
  }
}

</mosaic_0001>

<llo_original>
// kernel: tpu_custom_call.1
$region0: #{tpu_custom_call.1}
  #allocation0 [shape = 'u32[]', space=smem, size = 0x4, offset = 0x4, fixed_abs, tag = 'smem constant byte address 0x4 - core index']
  #allocation1 [shape = 'u32[144,128]{1,0:T(1,128)}', space=vmem, size = 0x12000, scoped, tag = 'internal scratch']
  %s0 = inlined_call_operand.vmem [shape: f32[2,128], index: 0, kind: input, shape index: {}]
  %s1 = inlined_call_operand.vmem [shape: bf16[128,16], index: 1, kind: input, shape index: {}]
  %s2 = inlined_call_operand.hbm [shape: s8[2,384], index: 2, kind: output, shape index: {}]
  %s3 = sld [smem:[#allocation0]]
  $region18: #{tpu_custom_call.1} parent=0
    _
  %s5 = ssub.s32 1, %s3
  %s6 = scalar_select 0, %s5, %s3
  $region1: #{tpu_custom_call.1} parent=0
    #allocation2 [shape = 'u8[1536]{0}', space=vmem, size = 0x800, scoped, tag = 'output window, operand 0, single buffered']
    #allocation3 [shape = 's32[1]{0}', space=sflag, size = 0x4, scoped, tag = 'scoped memory for tpu_custom_call.1']
    %7 = vsyncpa [#allocation3], 0
    // Predicated region
    $region2: #{tpu_custom_call.1} parent=1 // pred_check
      _
    $region3: #{tpu_custom_call.1} parent=1 // pred_check_branch
      %9 = sbr.rel (0) target = $region5
    $region4: #{tpu_custom_call.1} parent=1 // pred_region
      _
    $region5: #{tpu_custom_call.1} parent=1 // pred_fallthru
      _
    // Predicated region
    $region6: #{tpu_custom_call.1} parent=1 // pred_check
      _
    $region7: #{tpu_custom_call.1} parent=1 // pred_check_branch
      %11 = sbr.rel (0) target = $region9
    $region8: #{tpu_custom_call.1} parent=1 // pred_region
      _
    $region9: #{tpu_custom_call.1} parent=1 // pred_fallthru
      _
    %v15 = vld [vmem:[%s0] sm:$0x3]
    %vm16 = vcmp.ne.f32.partialorder %v15, 0.0
    %v17 = vsel %vm16, 1, 0
    %v18 = vcvt.s32.f32 %v17
    %v19 = vpack.c.bf16 %v18, %v18
    %v20 = vld [vmem:[%s1] sm:$0xf]
    %v21 = vld [vmem:[%s1 + $0x4] sm:$0xf]
    %v22 = vld [vmem:[%s1 + $0x8] sm:$0xf]
    %v23 = vld [vmem:[%s1 + $0xc] sm:$0xf]
    %v24 = vld [vmem:[%s1 + $0x10] sm:$0xf]
    %v25 = vld [vmem:[%s1 + $0x14] sm:$0xf]
    %v26 = vld [vmem:[%s1 + $0x18] sm:$0xf]
    %v27 = vld [vmem:[%s1 + $0x1c] sm:$0xf]
    %v28 = vld [vmem:[%s1 + $0x20] sm:$0xf]
    %v29 = vld [vmem:[%s1 + $0x24] sm:$0xf]
    %v30 = vld [vmem:[%s1 + $0x28] sm:$0xf]
    %v31 = vld [vmem:[%s1 + $0x2c] sm:$0xf]
    %v32 = vld [vmem:[%s1 + $0x30] sm:$0xf]
    %v33 = vld [vmem:[%s1 + $0x34] sm:$0xf]
    %v34 = vld [vmem:[%s1 + $0x38] sm:$0xf]
    %v35 = vld [vmem:[%s1 + $0x3c] sm:$0xf]
    %v52 = vunpack.c.l.b16 %v20
    %v53 = vunpack.c.l.b16 %v21
    %v54 = vunpack.c.l.b16 %v22
    %v55 = vunpack.c.l.b16 %v23
    %v56 = vunpack.c.l.b16 %v24
    %v57 = vunpack.c.l.b16 %v25
    %v58 = vunpack.c.l.b16 %v26
    %v59 = vunpack.c.l.b16 %v27
    %v60 = vunpack.c.l.b16 %v28
    %v61 = vunpack.c.l.b16 %v29
    %v62 = vunpack.c.l.b16 %v30
    %v63 = vunpack.c.l.b16 %v31
    %v64 = vunpack.c.l.b16 %v32
    %v65 = vunpack.c.l.b16 %v33
    %v66 = vunpack.c.l.b16 %v34
    %v67 = vunpack.c.l.b16 %v35
    %v68 = vpack.c.b16 %v53, %v52
    %v69 = vpack.c.b16 %v55, %v54
    %v70 = vpack.c.b16 %v57, %v56
    %v71 = vpack.c.b16 %v59, %v58
    %v72 = vpack.c.b16 %v61, %v60
    %v73 = vpack.c.b16 %v63, %v62
    %v74 = vpack.c.b16 %v65, %v64
    %v75 = vpack.c.b16 %v67, %v66
    %84 = vmatprep.subr.bf16.mxu0 0
    %85 = vmatpush1.bf16.msra.mxu0 %v75
    %86 = vmatprep.subr.bf16.mxu0 0
    %87 = vmatpush1.bf16.msra.mxu0 %v74
    %88 = vmatprep.subr.bf16.mxu0 0
    %89 = vmatpush1.bf16.msra.mxu0 %v73
    %90 = vmatprep.subr.bf16.mxu0 0
    %91 = vmatpush1.bf16.msra.mxu0 %v72
    %92 = vmatprep.subr.bf16.mxu0 0
    %93 = vmatpush1.bf16.msra.mxu0 %v71
    %94 = vmatprep.subr.bf16.mxu0 0
    %95 = vmatpush1.bf16.msra.mxu0 %v70
    %96 = vmatprep.subr.bf16.mxu0 0
    %97 = vmatpush1.bf16.msra.mxu0 %v69
    %98 = vmatprep.subr.bf16.mxu0 0
    %99 = vmatpush1.bf16.msra.mxu0 %v68
    %100 = vmatprep.subr.bf16.mxu0 0
    %101 = vmatpush2.bf16.msra.mxu0 0
    %102 = vmatprep.subr.bf16.mxu0 0
    %103 = vmatpush2.bf16.msra.mxu0 0
    %104 = vmatprep.subr.bf16.mxu0 0
    %105 = vmatpush2.bf16.msra.mxu0 0
    %106 = vmatprep.subr.bf16.mxu0 0
    %107 = vmatpush2.bf16.msra.mxu0 0
    %108 = vmatprep.subr.bf16.mxu0 0
    %109 = vmatpush2.bf16.msra.mxu0 0
    %110 = vmatprep.subr.bf16.mxu0 0
    %111 = vmatpush2.bf16.msra.mxu0 0
    %112 = vmatprep.subr.bf16.mxu0 0
    %113 = vmatpush2.bf16.msra.mxu0 0
    %114 = vmatprep.subr.bf16.mxu0 0
    %115 = vmatpush2.bf16.msra.mxu0 0
    %116 = vmatprep.mubr.bf16.mxu0 0
    %117 = vmatmul.mubr.bf16.gmra.mxu0 %v19
    %v118 = vpop.f32.mrf.mxu0
    %v119 = vadd.f32 0.0, %v118
    %v120 = vpop.f32.mrf.mxu0
    %v121 = vpop.f32.mrf.mxu0
    %v122 = vpop.f32.mrf.mxu0
    %123 = vdwg.mxu0
    %vm124 = vcmp.eq.f32.partialorder %v119, 0.0
    %v125 = vlaneseq
    %v126 = vand.u32 %v125, 127
    %v127 = vsel %vm124, %v126, 16
    %vm128 = vcmask 123904
    %v129 = vsel %vm128, %v127, 2147483647
    %v130 = vand.u32 %v129, 65535
    %v131 = vshra.s32 %v129, 16
    %v132 = vcvt.s32.f32 %v130
    %v133 = vcvt.s32.f32 %v131
    %134 = vmin.xlane.f32.xlu0 %v133
    %v135 = vpop.xlane.xlu0 %134
    %vm136 = vcmp.eq.f32.partialorder %v133, %v135
    %v137 = vsel %vm136, %v132, inf
    %138 = vmin.xlane.f32.xlu0 %v137
    %v139 = vpop.xlane.xlu0 %138
    %v140 = vcvt.f32.s32 %v139
    %v141 = vcvt.f32.s32 %v135
    %v142 = vshll.u32 %v141, 16
    %v143 = vadd.s32 %v142, %v140
    %v144 = vadd.s32 %v126, 128
    %v145 = vadd.s32 %v126, 256
    %vm146 = vcmp.lt.s32.totalorder %v126, %v143
    %vm147 = vcmp.lt.s32.totalorder %v144, %v143
    %vm148 = vcmp.lt.s32.totalorder %v145, %v143
    %vm149 = vmpackc.low %vm146, %vm146
    %vm150 = vmpackc.even %vm149, %vm149
    %vm151 = vmpackc.low %vm147, %vm147
    %vm152 = vmpackc.even %vm151, %vm151
    %vm153 = vmpackc.low %vm148, %vm148
    %vm154 = vmpackc.even %vm153, %vm153
    %v155 = vsel %vm150, 16843009, 0
    %v156 = vsel %vm152, 16843009, 0
    %v157 = vsel %vm154, 16843009, 0
    %v158 = vcombine.low %v155, %v156
    %v160 = vunpack.c.l.s4 1966171168
    %v161 = vunpack.c.0.s8 %v160
    %v162 = vlaneseq
    %v163 = vshrl.u32 %v162, 7
    %v164 = vsub.s32 %v161, %v163
    %v165 = vrot.slane %v158, %v164
    %v167 = vunpack.c.l.s4 1966171168
    %v168 = vunpack.c.0.s8 %v167
    %v169 = vlaneseq
    %v170 = vshrl.u32 %v169, 7
    %v171 = vsub.s32 %v168, %v170
    %v172 = vrot.slane %v157, %v171
    %v173 = vcombine.low %v165, %v172
    %v175 = vunpack.c.l.s4 1966171168
    %v176 = vunpack.c.0.s8 %v175
    %v177 = vlaneseq
    %v178 = vshrl.u32 %v177, 7
    %v179 = vsub.s32 %v176, %v178
    %v180 = vrot.slane %v173, %v179
    %vm181 = vcmask 1040384
    %vm182 = vsmask.f32 256
    %vm183 = vmand %vm181, %vm182
    %vm184 = vcmask 1041409
    %vm185 = vsmask.f32 1280
    %vm186 = vmand %vm184, %vm185
    %vm187 = vmor %vm186, %vm183
    %vm188 = vcmask 1042434
    %vm189 = vsmask.f32 2304
    %vm190 = vmand %vm188, %vm189
    %vm191 = vmor %vm190, %vm187
    %v192 = vld [vmem:[#allocation2] sm:$0x7]
    %v193 = vsel %vm191, %v180, %v192
    %194 = vst [vmem:[#allocation2] sm:$0x7] %v193
    // Predicated region
    $region10: #{tpu_custom_call.1} parent=1 // pred_check
      _
    $region11: #{tpu_custom_call.1} parent=1 // pred_check_branch
      %196 = sbr.rel (0) target = $region13
    $region12: #{tpu_custom_call.1} parent=1 // pred_region
      %s198 = ssub.s32 48, 48
      %199 = vsyncadd [#allocation3], %s198
      %s201 = sshll.u32 [#allocation2], 4
      %s202 = int_to_ptr.vmem [resolvable:$true] %s201
      %204 = dma.vmem_to_hbm [thread:$0]  %s202, 48, %s2, [#allocation3]
    $region13: #{tpu_custom_call.1} parent=1 // pred_fallthru
      _
    // Predicated region
    $region14: #{tpu_custom_call.1} parent=1 // pred_check
      _
    $region15: #{tpu_custom_call.1} parent=1 // pred_check_branch
      %206 = sbr.rel (0) target = $region17
    $region16: #{tpu_custom_call.1} parent=1 // pred_region
      %207 = dma.done [#allocation3], 48
    $region17: #{tpu_custom_call.1} parent=1 // pred_fallthru
      _
    %208 = vsyncpa [#allocation3], 1

</llo_original>
